<compile_context>
chip_gen: v6e
topology: v6e:2x2x1
jax: 0.10.0
libtpu: 0.0.40
codegen_flags: <defaults>
</compile_context>

<pallas_src>
import jax
import jax.numpy as jnp
from jax import lax
from jax.experimental import pallas as pl
from jax.experimental.pallas import tpu as pltpu


def _round_up(x: int, m: int) -> int:
    return (x + m - 1) // m * m


# Leave headroom under the 32 MiB scoped-VMEM limit (and half of v7x's 64 MiB physical).
_VMEM_STEP_BUDGET = 24 * 1024 * 1024


def _vmem_footprint(tb: int, tk: int, e_pad: int, k_loop: bool) -> int:
    x_bytes = 2 * tb * tk * 2           # bf16 x, double-buffered
    w_bytes = 2 * tk * e_pad * 2        # bf16 w, double-buffered (worst case)
    out_bytes = 2 * tb * e_pad * 4      # f32 out, double-buffered
    acc_bytes = tb * e_pad * 4 if k_loop else 0
    bias_bytes = 2 * e_pad * 4
    return x_bytes + w_bytes + out_bytes + acc_bytes + bias_bytes


def _embed_kernel_fused(x_ref, w_ref, b_ref, o_ref):
    # Single K step: weight tile covers all of F_pad and its block index is constant
    # over the batch grid, so it is DMA'd once and stays VMEM-resident.
    # x_ref: (tb, F_pad) bf16  w_ref: (F_pad, E_pad) bf16  b_ref: (1, E_pad) f32
    y = jnp.dot(x_ref[...], w_ref[...], preferred_element_type=jnp.float32)
    y = y + b_ref[...]
    # F.normalize(dim=1): y / max(||y||, 1e-12) == y * rsqrt(max(||y||^2, 1e-24))
    sumsq = jnp.sum(y * y, axis=1, keepdims=True)
    o_ref[...] = y * lax.rsqrt(jnp.maximum(sumsq, jnp.float32(1e-24)))


def _embed_kernel_kloop(x_ref, w_ref, b_ref, o_ref, acc_ref):
    # Fallback for in_features too large to keep the whole weight in VMEM.
    # x_ref: (tb, tk) bf16  w_ref: (tk, E_pad) bf16  acc_ref: (tb, E_pad) f32 scratch
    k = pl.program_id(1)

    @pl.when(k == 0)
    def _init():
        acc_ref[...] = jnp.zeros_like(acc_ref)

    acc_ref[...] += jnp.dot(x_ref[...], w_ref[...],
                            preferred_element_type=jnp.float32)

    @pl.when(k == pl.num_programs(1) - 1)
    def _finalize():
        y = acc_ref[...] + b_ref[...]
        sumsq = jnp.sum(y * y, axis=1, keepdims=True)
        o_ref[...] = y * lax.rsqrt(jnp.maximum(sumsq, jnp.float32(1e-24)))


def make_mock_embedding_forward(weight, bias, *, tb=512, tk=None,
                                weight_resident_bytes=8 * 1024 * 1024):
    """Pre-packs params once (bf16 cast + pad) and returns a jit-able forward(data).

    weight: (in_features, embedding_dim)  -- transpose of PyTorch nn.Linear's (E, F).
    bias:   (embedding_dim,)
    """
    F_dim, E = weight.shape
    E_pad = _round_up(E, 128)

    if tk is None:
        f_pad128 = _round_up(F_dim, 128)
        if f_pad128 * E_pad * 2 <= weight_resident_bytes:
            tk_eff = f_pad128      # whole weight VMEM-resident; K axis collapses
        else:
            tk_eff = 2048          # stream weight in lane-aligned K chunks
    else:
        tk_eff = _round_up(tk, 128)
    F_pad = _round_up(F_dim, tk_eff)
    k_steps = F_pad // tk_eff

    # One-time packing (done here, not per call): saves a full weight read+write
    # per forward invocation.
    w_pad = jnp.pad(jnp.asarray(weight).astype(jnp.bfloat16),
                    ((0, F_pad - F_dim), (0, E_pad - E)))
    b_pad = jnp.pad(jnp.asarray(bias).astype(jnp.float32),
                    (0, E_pad - E)).reshape(1, E_pad)

    def forward(data):
        B = data.shape[0]
        # data[:, :, :100, :100].float().reshape(B, -1); streamed as bf16 with f32 accum.
        x = data[:, :, :100, :100].reshape(B, -1).astype(jnp.bfloat16)
        assert x.shape[1] == F_dim, (x.shape, F_dim)

        # --- batch tiling ---------------------------------------------------
        b8 = _round_up(B, 8)
        tb_eff = min(tb, b8)
        if b8 >= 16:
            # Guarantee >= 2 batch tiles so the "parallel" axis can shard across
            # v7x's 2 TensorCores (no cost on 1-TC v5e/v6e).
            half = _round_up(-(-b8 // 2), 8)
            tb_eff = min(tb_eff, max(8, half))
        # Cap the double-buffered VMEM footprint (v7x has only 64 MiB physical).
        while (tb_eff > 8 and
               _vmem_footprint(tb_eff, tk_eff, E_pad, k_steps > 1) > _VMEM_STEP_BUDGET):
            tb_eff = max(8, _round_up(tb_eff // 2, 8))

        B_pad = _round_up(B, tb_eff)
        x = jnp.pad(x, ((0, B_pad - B), (0, F_pad - F_dim)))

        compiler_params = pltpu.CompilerParams(
            dimension_semantics=(("parallel",) if k_steps == 1
                                 else ("parallel", "arbitrary")),
            vmem_limit_bytes=32 * 1024 * 1024,
            # Let XLA fuse the crop/cast/reshape/pad producer into the x operand.
            allow_input_fusion=[True, False, False],
        )
        out_shape = jax.ShapeDtypeStruct((B_pad, E_pad), jnp.float32)

        if k_steps == 1:
            grid_spec = pltpu.PrefetchScalarGridSpec(
                num_scalar_prefetch=0,
                grid=(B_pad // tb_eff,),
                in_specs=[
                    pl.BlockSpec((tb_eff, F_pad), lambda i: (i, 0)),
                    # Constant block index -> weight DMA'd once, VMEM-resident.
                    pl.BlockSpec((F_pad, E_pad), lambda i: (0, 0)),
                    pl.BlockSpec((1, E_pad), lambda i: (0, 0)),
                ],
                out_specs=pl.BlockSpec((tb_eff, E_pad), lambda i: (i, 0)),
            )
            kernel = _embed_kernel_fused
        else:
            grid_spec = pltpu.PrefetchScalarGridSpec(
                num_scalar_prefetch=0,
                grid=(B_pad // tb_eff, k_steps),   # reduction (K) axis last
                in_specs=[
                    pl.BlockSpec((tb_eff, tk_eff), lambda i, k: (i, k)),
                    pl.BlockSpec((tk_eff, E_pad), lambda i, k: (k, 0)),
                    pl.BlockSpec((1, E_pad), lambda i, k: (0, 0)),
                ],
                out_specs=pl.BlockSpec((tb_eff, E_pad), lambda i, k: (i, 0)),
                scratch_shapes=[pltpu.VMEM((tb_eff, E_pad), jnp.float32)],
            )
            kernel = _embed_kernel_kloop

        out = pl.pallas_call(
            kernel,
            out_shape=out_shape,
            grid_spec=grid_spec,
            compiler_params=compiler_params,
        )(x, w_pad, b_pad)

        # Lane-dense (E_pad=128) f32 output -> unmasked stores; pad sliced off here.
        return out[:B, :E]

    return forward


def init_params(key, in_features, embedding_dim):
    """Deterministic init mimicking nn.Linear defaults (uniform +/- 1/sqrt(fan_in))."""
    kw, kb = jax.random.split(key)
    bound = 1.0 / jnp.sqrt(jnp.float32(in_features))
    # Stored as (F, E) = transpose of PyTorch's (E, F) weight for the kernel matmul.
    weight = jax.random.uniform(kw, (in_features, embedding_dim),
                                dtype=jnp.float32, minval=-bound, maxval=bound)
    bias = jax.random.uniform(kb, (embedding_dim,),
                              dtype=jnp.float32, minval=-bound, maxval=bound)
    return weight, bias


if __name__ == "__main__":
    key = jax.random.PRNGKey(0)
    k_data, k_params = jax.random.split(key)

    # Small shapes consistent with the module: NCHW input, spatial <= 100 so the
    # :100 crop is a pass-through; embedding_dim = 32.
    B, C, H, W = 2, 4, 16, 16
    embedding_dim = 32
    data = jax.random.normal(k_data, (B, C, H, W), dtype=jnp.float32)

    in_features = C * min(H, 100) * min(W, 100)   # 4 * 16 * 16 = 1024
    weight, bias = init_params(k_params, in_features, embedding_dim)

    # Reference in plain JAX (same bf16 input rounding, f32 accumulation).
    # NOTE: inputs are bf16-rounded before the MXU; vs. a pure-f32 PyTorch Linear
    # expect ~1e-3 relative differences pre-normalization.
    x_ref = data[:, :, :100, :100].reshape(B, -1).astype(jnp.bfloat16).astype(jnp.float32)
    w_ref = weight.astype(jnp.bfloat16).astype(jnp.float32)
    y_ref = jnp.dot(x_ref, w_ref, preferred_element_type=jnp.float32) + bias
    nrm = jnp.sqrt(jnp.sum(y_ref * y_ref, axis=1, keepdims=True))
    y_ref = y_ref / jnp.maximum(nrm, 1e-12)

    # Path 1 (common): weight VMEM-resident, K axis collapsed.
    fwd = jax.jit(make_mock_embedding_forward(weight, bias))
    out = jax.block_until_ready(fwd(data))
    assert out.shape == (B, embedding_dim), out.shape
    assert jnp.allclose(out, y_ref, atol=1e-4, rtol=1e-4), "mismatch (resident path)"
    assert jnp.allclose(jnp.linalg.norm(out, axis=1), 1.0, atol=1e-5)

    # Path 2 (fallback): force the K-loop accumulator kernel with a small tk to
    # validate it end to end (used when the weight is too big to hold in VMEM).
    fwd_kloop = jax.jit(make_mock_embedding_forward(weight, bias, tk=256))
    out2 = jax.block_until_ready(fwd_kloop(data))
    assert jnp.allclose(out2, y_ref, atol=1e-4, rtol=1e-4), "mismatch (K-loop path)"

    print("KERNEL_OK")
</pallas_src>

<mosaic_0001>
module attributes {stable_mosaic.version = 11 : i64} {
  func.func @_embed_kernel_fused(%arg0: i32, %arg1: memref<8x1024xbf16, #tpu.memory_space<vmem>>, %arg2: memref<1024x128xbf16, #tpu.memory_space<vmem>>, %arg3: memref<1x128xf32, #tpu.memory_space<vmem>>, %arg4: memref<8x128xf32, #tpu.memory_space<vmem>>) attributes {dimension_semantics = [#tpu.dimension_semantics<parallel>], iteration_bounds = array<i64: 1>, scalar_prefetch = 0 : i64, scratch_operands = 0 : i64, tpu.core_type = #tpu.core_type<tc>, window_params = [{transform_indices = @transform_0, window_bounds = array<i64: 8, 1024>}, {pipeline_mode = #tpu.pipeline_mode<synchronous>, transform_indices = @transform_1, window_bounds = array<i64: 1024, 128>}, {pipeline_mode = #tpu.pipeline_mode<synchronous>, transform_indices = @transform_2, window_bounds = array<i64: 1, 128>}, {transform_indices = @transform_3, window_bounds = array<i64: 8, 128>}]} {
    %c0 = arith.constant 0 : index
    %c0_0 = arith.constant 0 : index
    %0 = vector.load %arg1[%c0, %c0_0] : memref<8x1024xbf16, #tpu.memory_space<vmem>>, vector<8x1024xbf16>
    %c0_1 = arith.constant 0 : index
    %c0_2 = arith.constant 0 : index
    %1 = vector.load %arg2[%c0_1, %c0_2] : memref<1024x128xbf16, #tpu.memory_space<vmem>>, vector<1024x128xbf16>
    %cst = arith.constant dense<0.000000e+00> : vector<8x128xf32>
    %2 = tpu.matmul %0, %1, %cst {dimension_numbers = #tpu.dot_dimension_numbers<[1], [0], [0], [1], [0, 0, 1, 1], [], []>} : vector<8x1024xbf16>, vector<1024x128xbf16>, vector<8x128xf32> -> vector<8x128xf32>
    %c0_3 = arith.constant 0 : index
    %c0_4 = arith.constant 0 : index
    %3 = vector.load %arg3[%c0_3, %c0_4] : memref<1x128xf32, #tpu.memory_space<vmem>>, vector<1x128xf32>
    %4 = vector.broadcast %3 : vector<1x128xf32> to vector<8x128xf32>
    %5 = arith.addf %2, %4 : vector<8x128xf32>
    %6 = arith.mulf %5, %5 : vector<8x128xf32>
    %cst_5 = arith.constant dense<0.000000e+00> : vector<8xf32>
    %7 = vector.multi_reduction <add>, %6, %cst_5 [1] : vector<8x128xf32> to vector<8xf32>
    %8 = vector.shape_cast %7 : vector<8xf32> to vector<8x1xf32>
    %cst_6 = arith.constant 1.000000e-24 : f32
    %9 = vector.broadcast %cst_6 : f32 to vector<8x1xf32>
    %10 = arith.maximumf %8, %9 : vector<8x1xf32>
    %11 = math.rsqrt %10 : vector<8x1xf32>
    %12 = vector.broadcast %11 : vector<8x1xf32> to vector<8x128xf32>
    %13 = arith.mulf %5, %12 : vector<8x128xf32>
    %c0_7 = arith.constant 0 : index
    %c0_8 = arith.constant 0 : index
    %14 = vector.load %arg4[%c0_7, %c0_8] : memref<8x128xf32, #tpu.memory_space<vmem>>, vector<8x128xf32>
    tpu.vector_store %arg4[%c0_7, %c0_8], %13 {strides = array<i32>} : memref<8x128xf32, #tpu.memory_space<vmem>>, vector<8x128xf32>,
    return
  }
  func.func @transform_0(%arg0: i32) -> (i32, i32) {
    %c0_i32 = arith.constant 0 : i32
    %c0_i32_0 = arith.constant 0 : i32
    return %arg0, %c0_i32 : i32, i32
  }
  func.func @transform_1(%arg0: i32) -> (i32, i32) {
    %c0_i32 = arith.constant 0 : i32
    %c0_i32_0 = arith.constant 0 : i32
    %c0_i32_1 = arith.constant 0 : i32
    return %c0_i32, %c0_i32_0 : i32, i32
  }
  func.func @transform_2(%arg0: i32) -> (i32, i32) {
    %c0_i32 = arith.constant 0 : i32
    %c0_i32_0 = arith.constant 0 : i32
    %c0_i32_1 = arith.constant 0 : i32
    return %c0_i32, %c0_i32_0 : i32, i32
  }
  func.func @transform_3(%arg0: i32) -> (i32, i32) {
    %c0_i32 = arith.constant 0 : i32
    %c0_i32_0 = arith.constant 0 : i32
    return %arg0, %c0_i32 : i32, i32
  }
}

</mosaic_0001>

<llo_original>
// kernel: forward.2
$region0: #{forward.2}
  #allocation0 [shape = 'u32[]', space=smem, size = 0x4, offset = 0x4, fixed_abs, tag = 'smem constant byte address 0x4 - core index']
  #allocation1 [shape = 'u32[144,128]{1,0:T(1,128)}', space=vmem, size = 0x12000, scoped, tag = 'internal scratch']
  #allocation2 [shape = 'u32[2048]{0}', space=vmem, size = 0x2000, scoped, tag = 'scoped memory for forward.2']
  #allocation3 [shape = 'u32[2048]{0}', space=vmem, size = 0x2000, scoped, tag = 'scoped memory for forward.2']
  #allocation4 [shape = 'u32[2048]{0}', space=vmem, size = 0x2000, scoped, tag = 'scoped memory for forward.2']
  #allocation5 [shape = 'u32[2048]{0}', space=vmem, size = 0x2000, scoped, tag = 'scoped memory for forward.2']
  #allocation6 [shape = 'u32[2048]{0}', space=vmem, size = 0x2000, scoped, tag = 'scoped memory for forward.2']
  %s0 = inlined_call_operand.hbm [shape: bf16[1024,128], index: 0, kind: input, shape index: {}]
  %s1 = inlined_call_operand.vmem [shape: f32[1,128], index: 1, kind: input, shape index: {}]
  %s2 = inlined_call_operand.vmem [shape: bf16[2,1024], index: 2, kind: input, shape index: {}]
  %s3 = inlined_call_operand.<no memory space> [shape: bf16[], index: 3, kind: input, shape index: {}]
  %s4 = inlined_call_operand.vmem [shape: f32[8,128], index: 4, kind: output, shape index: {}]
  %s5 = sld [smem:[#allocation0]]
  $region26: #{forward.2} parent=0
    _
  %s7 = ssub.s32 1, %s5
  %s8 = scalar_select 0, %s7, %s5
  %v9 = vstv %s3
  %v10 = vunpack.i.l.bf16 %v9
  %v12 = vunpack.i.h.bf16 %v9
  $region1: #{forward.2} parent=0
    #allocation7 [shape = 'u8[262144]{0}', space=vmem, size = 0x40000, scoped, tag = 'input window, operand 1, single buffered']
    #allocation8 [shape = 's32[1]{0}', space=sflag, size = 0x4, scoped, tag = 'scoped memory for forward.2']
    #allocation9 [shape = 'u8[16384]{0}', space=vmem, size = 0x4000, dematerialized = true, scoped, tag = 'FusionAdapter Buffer %fusion.1 = bf16[8,1024]{1,0:T(8,128)(2,1)} fusion(%param_2.1, %param_3), kind=kLoop, calls=%fused_computation.1.clone, metadata={op_name="jit(forward)/jit(_pad)/pad" stack_frame_id=8}']
    %14 = vsyncpa [#allocation8], 0
    // Predicated region
    $region2: #{forward.2} parent=1 // pred_check
      _
    $region3: #{forward.2} parent=1 // pred_check_branch
      %16 = sbr.rel (0) target = $region5
    $region4: #{forward.2} parent=1 // pred_region
      _
    $region5: #{forward.2} parent=1 // pred_fallthru
      _
    // Predicated region
    $region6: #{forward.2} parent=1 // pred_check
      _
    $region7: #{forward.2} parent=1 // pred_check_branch
      %18 = sbr.rel (0) target = $region9
    $region8: #{forward.2} parent=1 // pred_region
      %s20 = ssub.s32 8192, 8192
      %21 = vsyncadd [#allocation8], %s20
      %s22 = sshll.u32 [#allocation7], 4
      %s23 = int_to_ptr.vmem [resolvable:$true] %s22
      %28 = dma.hbm_to_vmem [thread:$0]  %s0, 8192, %s23, [#allocation8], 64, 64, 4
    $region9: #{forward.2} parent=1 // pred_fallthru
      _
    // Predicated region
    $region10: #{forward.2} parent=1 // pred_check
      _
    $region11: #{forward.2} parent=1 // pred_check_branch
      %30 = sbr.rel (0) target = $region13
    $region12: #{forward.2} parent=1 // pred_region
      _
    $region13: #{forward.2} parent=1 // pred_fallthru
      _
    // Predicated region
    $region14: #{forward.2} parent=1 // pred_check
      _
    $region15: #{forward.2} parent=1 // pred_check_branch
      %32 = sbr.rel (0) target = $region17
    $region16: #{forward.2} parent=1 // pred_region
      %33 = dma.done [#allocation8], 8192
    $region17: #{forward.2} parent=1 // pred_fallthru
      _
    %s35 = sor.u32 3, 1
    %s36 = sand.u32 %s35, 1
    %v37 = vld [vmem:[%s2] sm:%s36]
    %v38 = vunpack.c.l.bf16 %v37
    %v39 = vunpack.c.h.bf16 %v37
    %v40 = vlaneseq
    %v41 = vshrl.u32 %v40, 7
    %vm43 = vcmp.lt.s32.totalorder %v41, 2
    %v44 = vsel %vm43, %v38, %v10
    %v45 = vpack.c.bf16 0.0, %v44
    %s47 = ssub.s32 16, 1
    %48 = vst [vmem:[#allocation9] sm:%s47] %v45
    %s49 = scalar_lea.vmem %s2, 1
    %s51 = sor.u32 3, 1
    %s52 = sand.u32 %s51, 1
    %v53 = vld [vmem:[%s49] sm:%s52]
    %v54 = vunpack.c.l.bf16 %v53
    %v55 = vunpack.c.h.bf16 %v53
    %v56 = vlaneseq
    %v57 = vshrl.u32 %v56, 7
    %vm59 = vcmp.lt.s32.totalorder %v57, 2
    %v60 = vsel %vm59, %v54, %v10
    %s61 = scalar_lea.vmem [#allocation9], 4
    %v62 = vpack.c.bf16 0.0, %v60
    %s64 = ssub.s32 16, 1
    %65 = vst [vmem:[%s61] sm:%s64] %v62
    %s66 = scalar_lea.vmem %s2, 2
    %s68 = sor.u32 3, 1
    %s69 = sand.u32 %s68, 1
    %v70 = vld [vmem:[%s66] sm:%s69]
    %v71 = vunpack.c.l.bf16 %v70
    %v72 = vunpack.c.h.bf16 %v70
    %v73 = vlaneseq
    %v74 = vshrl.u32 %v73, 7
    %vm76 = vcmp.lt.s32.totalorder %v74, 2
    %v77 = vsel %vm76, %v71, %v10
    %s78 = scalar_lea.vmem [#allocation9], 8
    %v79 = vpack.c.bf16 0.0, %v77
    %s81 = ssub.s32 16, 1
    %82 = vst [vmem:[%s78] sm:%s81] %v79
    %s83 = scalar_lea.vmem %s2, 3
    %s85 = sor.u32 3, 1
    %s86 = sand.u32 %s85, 1
    %v87 = vld [vmem:[%s83] sm:%s86]
    %v88 = vunpack.c.l.bf16 %v87
    %v89 = vunpack.c.h.bf16 %v87
    %v90 = vlaneseq
    %v91 = vshrl.u32 %v90, 7
    %vm93 = vcmp.lt.s32.totalorder %v91, 2
    %v94 = vsel %vm93, %v88, %v10
    %s95 = scalar_lea.vmem [#allocation9], 12
    %v96 = vpack.c.bf16 0.0, %v94
    %s98 = ssub.s32 16, 1
    %99 = vst [vmem:[%s95] sm:%s98] %v96
    %s100 = scalar_lea.vmem %s2, 4
    %s102 = sor.u32 3, 1
    %s103 = sand.u32 %s102, 1
    %v104 = vld [vmem:[%s100] sm:%s103]
    %v105 = vunpack.c.l.bf16 %v104
    %v106 = vunpack.c.h.bf16 %v104
    %v107 = vlaneseq
    %v108 = vshrl.u32 %v107, 7
    %vm110 = vcmp.lt.s32.totalorder %v108, 2
    %v111 = vsel %vm110, %v105, %v10
    %s112 = scalar_lea.vmem [#allocation9], 16
    %v113 = vpack.c.bf16 0.0, %v111
    %s115 = ssub.s32 16, 1
    %116 = vst [vmem:[%s112] sm:%s115] %v113
    %s117 = scalar_lea.vmem %s2, 5
    %s119 = sor.u32 3, 1
    %s120 = sand.u32 %s119, 1
    %v121 = vld [vmem:[%s117] sm:%s120]
    %v122 = vunpack.c.l.bf16 %v121
    %v123 = vunpack.c.h.bf16 %v121
    %v124 = vlaneseq
    %v125 = vshrl.u32 %v124, 7
    %vm127 = vcmp.lt.s32.totalorder %v125, 2
    %v128 = vsel %vm127, %v122, %v10
    %s129 = scalar_lea.vmem [#allocation9], 20
    %v130 = vpack.c.bf16 0.0, %v128
    %s132 = ssub.s32 16, 1
    %133 = vst [vmem:[%s129] sm:%s132] %v130
    %s134 = scalar_lea.vmem %s2, 6
    %s136 = sor.u32 3, 1
    %s137 = sand.u32 %s136, 1
    %v138 = vld [vmem:[%s134] sm:%s137]
    %v139 = vunpack.c.l.bf16 %v138
    %v140 = vunpack.c.h.bf16 %v138
    %v141 = vlaneseq
    %v142 = vshrl.u32 %v141, 7
    %vm144 = vcmp.lt.s32.totalorder %v142, 2
    %v145 = vsel %vm144, %v139, %v10
    %s146 = scalar_lea.vmem [#allocation9], 24
    %v147 = vpack.c.bf16 0.0, %v145
    %s149 = ssub.s32 16, 1
    %150 = vst [vmem:[%s146] sm:%s149] %v147
    %s151 = scalar_lea.vmem %s2, 7
    %s153 = sor.u32 3, 1
    %s154 = sand.u32 %s153, 1
    %v155 = vld [vmem:[%s151] sm:%s154]
    %v156 = vunpack.c.l.bf16 %v155
    %v157 = vunpack.c.h.bf16 %v155
    %v158 = vlaneseq
    %v159 = vshrl.u32 %v158, 7
    %vm161 = vcmp.lt.s32.totalorder %v159, 2
    %v162 = vsel %vm161, %v156, %v10
    %s163 = scalar_lea.vmem [#allocation9], 28
    %v164 = vpack.c.bf16 0.0, %v162
    %s166 = ssub.s32 16, 1
    %167 = vst [vmem:[%s163] sm:%s166] %v164
    %v169 = vld [vmem:[#allocation9] sm:$0xff]
    %v170 = vld [vmem:[#allocation9 + $0x8] sm:$0xff]
    %v171 = vld [vmem:[#allocation9 + $0x10] sm:$0xff]
    %v172 = vld [vmem:[#allocation9 + $0x18] sm:$0xff]
    %v173 = vld [vmem:[#allocation7] sm:$0xf]
    %v174 = vld [vmem:[#allocation7 + $0x4] sm:$0xf]
    %v175 = vld [vmem:[#allocation7 + $0x8] sm:$0xf]
    %v176 = vld [vmem:[#allocation7 + $0xc] sm:$0xf]
    %v177 = vld [vmem:[#allocation7 + $0x10] sm:$0xf]
    %v178 = vld [vmem:[#allocation7 + $0x14] sm:$0xf]
    %v179 = vld [vmem:[#allocation7 + $0x18] sm:$0xf]
    %v180 = vld [vmem:[#allocation7 + $0x1c] sm:$0xf]
    %v181 = vld [vmem:[#allocation7 + $0x20] sm:$0xf]
    %v182 = vld [vmem:[#allocation7 + $0x24] sm:$0xf]
    %v183 = vld [vmem:[#allocation7 + $0x28] sm:$0xf]
    %v184 = vld [vmem:[#allocation7 + $0x2c] sm:$0xf]
    %v185 = vld [vmem:[#allocation7 + $0x30] sm:$0xf]
    %v186 = vld [vmem:[#allocation7 + $0x34] sm:$0xf]
    %v187 = vld [vmem:[#allocation7 + $0x38] sm:$0xf]
    %v188 = vld [vmem:[#allocation7 + $0x3c] sm:$0xf]
    %v189 = vld [vmem:[#allocation7 + $0x40] sm:$0xf]
    %v190 = vld [vmem:[#allocation7 + $0x44] sm:$0xf]
    %v191 = vld [vmem:[#allocation7 + $0x48] sm:$0xf]
    %v192 = vld [vmem:[#allocation7 + $0x4c] sm:$0xf]
    %v193 = vld [vmem:[#allocation7 + $0x50] sm:$0xf]
    %v194 = vld [vmem:[#allocation7 + $0x54] sm:$0xf]
    %v195 = vld [vmem:[#allocation7 + $0x58] sm:$0xf]
    %v196 = vld [vmem:[#allocation7 + $0x5c] sm:$0xf]
    %v197 = vld [vmem:[#allocation7 + $0x60] sm:$0xf]
    %v198 = vld [vmem:[#allocation7 + $0x64] sm:$0xf]
    %v199 = vld [vmem:[#allocation7 + $0x68] sm:$0xf]
    %v200 = vld [vmem:[#allocation7 + $0x6c] sm:$0xf]
    %v201 = vld [vmem:[#allocation7 + $0x70] sm:$0xf]
    %v202 = vld [vmem:[#allocation7 + $0x74] sm:$0xf]
    %v203 = vld [vmem:[#allocation7 + $0x78] sm:$0xf]
    %v204 = vld [vmem:[#allocation7 + $0x7c] sm:$0xf]
    %v205 = vld [vmem:[#allocation7 + $0x80] sm:$0xf]
    %v206 = vld [vmem:[#allocation7 + $0x84] sm:$0xf]
    %v207 = vld [vmem:[#allocation7 + $0x88] sm:$0xf]
    %v208 = vld [vmem:[#allocation7 + $0x8c] sm:$0xf]
    %v209 = vld [vmem:[#allocation7 + $0x90] sm:$0xf]
    %v210 = vld [vmem:[#allocation7 + $0x94] sm:$0xf]
    %v211 = vld [vmem:[#allocation7 + $0x98] sm:$0xf]
    %v212 = vld [vmem:[#allocation7 + $0x9c] sm:$0xf]
    %v213 = vld [vmem:[#allocation7 + $0xa0] sm:$0xf]
    %v214 = vld [vmem:[#allocation7 + $0xa4] sm:$0xf]
    %v215 = vld [vmem:[#allocation7 + $0xa8] sm:$0xf]
    %v216 = vld [vmem:[#allocation7 + $0xac] sm:$0xf]
    %v217 = vld [vmem:[#allocation7 + $0xb0] sm:$0xf]
    %v218 = vld [vmem:[#allocation7 + $0xb4] sm:$0xf]
    %v219 = vld [vmem:[#allocation7 + $0xb8] sm:$0xf]
    %v220 = vld [vmem:[#allocation7 + $0xbc] sm:$0xf]
    %v221 = vld [vmem:[#allocation7 + $0xc0] sm:$0xf]
    %v222 = vld [vmem:[#allocation7 + $0xc4] sm:$0xf]
    %v223 = vld [vmem:[#allocation7 + $0xc8] sm:$0xf]
    %v224 = vld [vmem:[#allocation7 + $0xcc] sm:$0xf]
    %v225 = vld [vmem:[#allocation7 + $0xd0] sm:$0xf]
    %v226 = vld [vmem:[#allocation7 + $0xd4] sm:$0xf]
    %v227 = vld [vmem:[#allocation7 + $0xd8] sm:$0xf]
    %v228 = vld [vmem:[#allocation7 + $0xdc] sm:$0xf]
    %v229 = vld [vmem:[#allocation7 + $0xe0] sm:$0xf]
    %v230 = vld [vmem:[#allocation7 + $0xe4] sm:$0xf]
    %v231 = vld [vmem:[#allocation7 + $0xe8] sm:$0xf]
    %v232 = vld [vmem:[#allocation7 + $0xec] sm:$0xf]
    %v233 = vld [vmem:[#allocation7 + $0xf0] sm:$0xf]
    %v234 = vld [vmem:[#allocation7 + $0xf4] sm:$0xf]
    %v235 = vld [vmem:[#allocation7 + $0xf8] sm:$0xf]
    %v236 = vld [vmem:[#allocation7 + $0xfc] sm:$0xf]
    %v237 = vld [vmem:[#allocation7 + $0x100] sm:$0xf]
    %v238 = vld [vmem:[#allocation7 + $0x104] sm:$0xf]
    %v239 = vld [vmem:[#allocation7 + $0x108] sm:$0xf]
    %v240 = vld [vmem:[#allocation7 + $0x10c] sm:$0xf]
    %v241 = vld [vmem:[#allocation7 + $0x110] sm:$0xf]
    %v242 = vld [vmem:[#allocation7 + $0x114] sm:$0xf]
    %v243 = vld [vmem:[#allocation7 + $0x118] sm:$0xf]
    %v244 = vld [vmem:[#allocation7 + $0x11c] sm:$0xf]
    %v245 = vld [vmem:[#allocation7 + $0x120] sm:$0xf]
    %v246 = vld [vmem:[#allocation7 + $0x124] sm:$0xf]
    %v247 = vld [vmem:[#allocation7 + $0x128] sm:$0xf]
    %v248 = vld [vmem:[#allocation7 + $0x12c] sm:$0xf]
    %v249 = vld [vmem:[#allocation7 + $0x130] sm:$0xf]
    %v250 = vld [vmem:[#allocation7 + $0x134] sm:$0xf]
    %v251 = vld [vmem:[#allocation7 + $0x138] sm:$0xf]
    %v252 = vld [vmem:[#allocation7 + $0x13c] sm:$0xf]
    %v253 = vld [vmem:[#allocation7 + $0x140] sm:$0xf]
    %v254 = vld [vmem:[#allocation7 + $0x144] sm:$0xf]
    %v255 = vld [vmem:[#allocation7 + $0x148] sm:$0xf]
    %v256 = vld [vmem:[#allocation7 + $0x14c] sm:$0xf]
    %v257 = vld [vmem:[#allocation7 + $0x150] sm:$0xf]
    %v258 = vld [vmem:[#allocation7 + $0x154] sm:$0xf]
    %v259 = vld [vmem:[#allocation7 + $0x158] sm:$0xf]
    %v260 = vld [vmem:[#allocation7 + $0x15c] sm:$0xf]
    %v261 = vld [vmem:[#allocation7 + $0x160] sm:$0xf]
    %v262 = vld [vmem:[#allocation7 + $0x164] sm:$0xf]
    %v263 = vld [vmem:[#allocation7 + $0x168] sm:$0xf]
    %v264 = vld [vmem:[#allocation7 + $0x16c] sm:$0xf]
    %v265 = vld [vmem:[#allocation7 + $0x170] sm:$0xf]
    %v266 = vld [vmem:[#allocation7 + $0x174] sm:$0xf]
    %v267 = vld [vmem:[#allocation7 + $0x178] sm:$0xf]
    %v268 = vld [vmem:[#allocation7 + $0x17c] sm:$0xf]
    %v269 = vld [vmem:[#allocation7 + $0x180] sm:$0xf]
    %v270 = vld [vmem:[#allocation7 + $0x184] sm:$0xf]
    %v271 = vld [vmem:[#allocation7 + $0x188] sm:$0xf]
    %v272 = vld [vmem:[#allocation7 + $0x18c] sm:$0xf]
    %v273 = vld [vmem:[#allocation7 + $0x190] sm:$0xf]
    %v274 = vld [vmem:[#allocation7 + $0x194] sm:$0xf]
    %v275 = vld [vmem:[#allocation7 + $0x198] sm:$0xf]
    %v276 = vld [vmem:[#allocation7 + $0x19c] sm:$0xf]
    %v277 = vld [vmem:[#allocation7 + $0x1a0] sm:$0xf]
    %v278 = vld [vmem:[#allocation7 + $0x1a4] sm:$0xf]
    %v279 = vld [vmem:[#allocation7 + $0x1a8] sm:$0xf]
    %v280 = vld [vmem:[#allocation7 + $0x1ac] sm:$0xf]
    %v281 = vld [vmem:[#allocation7 + $0x1b0] sm:$0xf]
    %v282 = vld [vmem:[#allocation7 + $0x1b4] sm:$0xf]
    %v283 = vld [vmem:[#allocation7 + $0x1b8] sm:$0xf]
    %v284 = vld [vmem:[#allocation7 + $0x1bc] sm:$0xf]
    %v285 = vld [vmem:[#allocation7 + $0x1c0] sm:$0xf]
    %v286 = vld [vmem:[#allocation7 + $0x1c4] sm:$0xf]
    %v287 = vld [vmem:[#allocation7 + $0x1c8] sm:$0xf]
    %v288 = vld [vmem:[#allocation7 + $0x1cc] sm:$0xf]
    %v289 = vld [vmem:[#allocation7 + $0x1d0] sm:$0xf]
    %v290 = vld [vmem:[#allocation7 + $0x1d4] sm:$0xf]
    %v291 = vld [vmem:[#allocation7 + $0x1d8] sm:$0xf]
    %v292 = vld [vmem:[#allocation7 + $0x1dc] sm:$0xf]
    %v293 = vld [vmem:[#allocation7 + $0x1e0] sm:$0xf]
    %v294 = vld [vmem:[#allocation7 + $0x1e4] sm:$0xf]
    %v295 = vld [vmem:[#allocation7 + $0x1e8] sm:$0xf]
    %v296 = vld [vmem:[#allocation7 + $0x1ec] sm:$0xf]
    %v297 = vld [vmem:[#allocation7 + $0x1f0] sm:$0xf]
    %v298 = vld [vmem:[#allocation7 + $0x1f4] sm:$0xf]
    %v299 = vld [vmem:[#allocation7 + $0x1f8] sm:$0xf]
    %v300 = vld [vmem:[#allocation7 + $0x1fc] sm:$0xf]
    %v301 = vld [vmem:[%s1] sm:$0x1]
    %v303 = vlaneseq
    %v304 = vshrl.u32 %v303, 7
    %v305 = vsub.s32 0, %v304
    %v306 = vrot.slane %v301, %v305
    %v312 = vunpack.c.l.b16 %v169
    %v313 = vunpack.c.h.b16 %v169
    %v314 = vunpack.c.l.b16 %v170
    %v315 = vunpack.c.h.b16 %v170
    %v316 = vunpack.c.l.b16 %v171
    %v317 = vunpack.c.h.b16 %v171
    %v318 = vunpack.c.l.b16 %v172
    %v319 = vunpack.c.h.b16 %v172
    %v320 = vpack.c.b16 %v312, %v312
    %v321 = vpack.c.b16 %v313, %v313
    %v322 = vpack.c.b16 %v314, %v314
    %v323 = vpack.c.b16 %v315, %v315
    %v324 = vpack.c.b16 %v316, %v316
    %v325 = vpack.c.b16 %v317, %v317
    %v326 = vpack.c.b16 %v318, %v318
    %v327 = vpack.c.b16 %v319, %v319
    %v464 = vunpack.c.l.b16 %v173
    %v465 = vunpack.c.l.b16 %v174
    %v466 = vunpack.c.l.b16 %v175
    %v467 = vunpack.c.l.b16 %v176
    %v468 = vunpack.c.l.b16 %v177
    %v469 = vunpack.c.l.b16 %v178
    %v470 = vunpack.c.l.b16 %v179
    %v471 = vunpack.c.l.b16 %v180
    %v472 = vunpack.c.l.b16 %v181
    %v473 = vunpack.c.l.b16 %v182
    %v474 = vunpack.c.l.b16 %v183
    %v475 = vunpack.c.l.b16 %v184
    %v476 = vunpack.c.l.b16 %v185
    %v477 = vunpack.c.l.b16 %v186
    %v478 = vunpack.c.l.b16 %v187
    %v479 = vunpack.c.l.b16 %v188
    %v480 = vunpack.c.l.b16 %v189
    %v481 = vunpack.c.l.b16 %v190
    %v482 = vunpack.c.l.b16 %v191
    %v483 = vunpack.c.l.b16 %v192
    %v484 = vunpack.c.l.b16 %v193
    %v485 = vunpack.c.l.b16 %v194
    %v486 = vunpack.c.l.b16 %v195
    %v487 = vunpack.c.l.b16 %v196
    %v488 = vunpack.c.l.b16 %v197
    %v489 = vunpack.c.l.b16 %v198
    %v490 = vunpack.c.l.b16 %v199
    %v491 = vunpack.c.l.b16 %v200
    %v492 = vunpack.c.l.b16 %v201
    %v493 = vunpack.c.l.b16 %v202
    %v494 = vunpack.c.l.b16 %v203
    %v495 = vunpack.c.l.b16 %v204
    %v496 = vunpack.c.l.b16 %v205
    %v497 = vunpack.c.l.b16 %v206
    %v498 = vunpack.c.l.b16 %v207
    %v499 = vunpack.c.l.b16 %v208
    %v500 = vunpack.c.l.b16 %v209
    %v501 = vunpack.c.l.b16 %v210
    %v502 = vunpack.c.l.b16 %v211
    %v503 = vunpack.c.l.b16 %v212
    %v504 = vunpack.c.l.b16 %v213
    %v505 = vunpack.c.l.b16 %v214
    %v506 = vunpack.c.l.b16 %v215
    %v507 = vunpack.c.l.b16 %v216
    %v508 = vunpack.c.l.b16 %v217
    %v509 = vunpack.c.l.b16 %v218
    %v510 = vunpack.c.l.b16 %v219
    %v511 = vunpack.c.l.b16 %v220
    %v512 = vunpack.c.l.b16 %v221
    %v513 = vunpack.c.l.b16 %v222
    %v514 = vunpack.c.l.b16 %v223
    %v515 = vunpack.c.l.b16 %v224
    %v516 = vunpack.c.l.b16 %v225
    %v517 = vunpack.c.l.b16 %v226
    %v518 = vunpack.c.l.b16 %v227
    %v519 = vunpack.c.l.b16 %v228
    %v520 = vunpack.c.l.b16 %v229
    %v521 = vunpack.c.l.b16 %v230
    %v522 = vunpack.c.l.b16 %v231
    %v523 = vunpack.c.l.b16 %v232
    %v524 = vunpack.c.l.b16 %v233
    %v525 = vunpack.c.l.b16 %v234
    %v526 = vunpack.c.l.b16 %v235
    %v527 = vunpack.c.l.b16 %v236
    %v528 = vunpack.c.l.b16 %v237
    %v529 = vunpack.c.l.b16 %v238
    %v530 = vunpack.c.l.b16 %v239
    %v531 = vunpack.c.l.b16 %v240
    %v532 = vunpack.c.l.b16 %v241
    %v533 = vunpack.c.l.b16 %v242
    %v534 = vunpack.c.l.b16 %v243
    %v535 = vunpack.c.l.b16 %v244
    %v536 = vunpack.c.l.b16 %v245
    %v537 = vunpack.c.l.b16 %v246
    %v538 = vunpack.c.l.b16 %v247
    %v539 = vunpack.c.l.b16 %v248
    %v540 = vunpack.c.l.b16 %v249
    %v541 = vunpack.c.l.b16 %v250
    %v542 = vunpack.c.l.b16 %v251
    %v543 = vunpack.c.l.b16 %v252
    %v544 = vunpack.c.l.b16 %v253
    %v545 = vunpack.c.l.b16 %v254
    %v546 = vunpack.c.l.b16 %v255
    %v547 = vunpack.c.l.b16 %v256
    %v548 = vunpack.c.l.b16 %v257
    %v549 = vunpack.c.l.b16 %v258
    %v550 = vunpack.c.l.b16 %v259
    %v551 = vunpack.c.l.b16 %v260
    %v552 = vunpack.c.l.b16 %v261
    %v553 = vunpack.c.l.b16 %v262
    %v554 = vunpack.c.l.b16 %v263
    %v555 = vunpack.c.l.b16 %v264
    %v556 = vunpack.c.l.b16 %v265
    %v557 = vunpack.c.l.b16 %v266
    %v558 = vunpack.c.l.b16 %v267
    %v559 = vunpack.c.l.b16 %v268
    %v560 = vunpack.c.l.b16 %v269
    %v561 = vunpack.c.l.b16 %v270
    %v562 = vunpack.c.l.b16 %v271
    %v563 = vunpack.c.l.b16 %v272
    %v564 = vunpack.c.l.b16 %v273
    %v565 = vunpack.c.l.b16 %v274
    %v566 = vunpack.c.l.b16 %v275
    %v567 = vunpack.c.l.b16 %v276
    %v568 = vunpack.c.l.b16 %v277
    %v569 = vunpack.c.l.b16 %v278
    %v570 = vunpack.c.l.b16 %v279
    %v571 = vunpack.c.l.b16 %v280
    %v572 = vunpack.c.l.b16 %v281
    %v573 = vunpack.c.l.b16 %v282
    %v574 = vunpack.c.l.b16 %v283
    %v575 = vunpack.c.l.b16 %v284
    %v576 = vunpack.c.l.b16 %v285
    %v577 = vunpack.c.l.b16 %v286
    %v578 = vunpack.c.l.b16 %v287
    %v579 = vunpack.c.l.b16 %v288
    %v580 = vunpack.c.l.b16 %v289
    %v581 = vunpack.c.l.b16 %v290
    %v582 = vunpack.c.l.b16 %v291
    %v583 = vunpack.c.l.b16 %v292
    %v584 = vunpack.c.l.b16 %v293
    %v585 = vunpack.c.l.b16 %v294
    %v586 = vunpack.c.l.b16 %v295
    %v587 = vunpack.c.l.b16 %v296
    %v588 = vunpack.c.l.b16 %v297
    %v589 = vunpack.c.l.b16 %v298
    %v590 = vunpack.c.l.b16 %v299
    %v591 = vunpack.c.l.b16 %v300
    %v592 = vpack.c.b16 %v465, %v464
    %v593 = vpack.c.b16 %v467, %v466
    %v594 = vpack.c.b16 %v469, %v468
    %v595 = vpack.c.b16 %v471, %v470
    %v596 = vpack.c.b16 %v473, %v472
    %v597 = vpack.c.b16 %v475, %v474
    %v598 = vpack.c.b16 %v477, %v476
    %v599 = vpack.c.b16 %v479, %v478
    %v600 = vpack.c.b16 %v481, %v480
    %v601 = vpack.c.b16 %v483, %v482
    %v602 = vpack.c.b16 %v485, %v484
    %v603 = vpack.c.b16 %v487, %v486
    %v604 = vpack.c.b16 %v489, %v488
    %v605 = vpack.c.b16 %v491, %v490
    %v606 = vpack.c.b16 %v493, %v492
    %v607 = vpack.c.b16 %v495, %v494
    %v608 = vpack.c.b16 %v497, %v496
    %v609 = vpack.c.b16 %v499, %v498
    %v610 = vpack.c.b16 %v501, %v500
    %v611 = vpack.c.b16 %v503, %v502
    %v612 = vpack.c.b16 %v505, %v504
    %v613 = vpack.c.b16 %v507, %v506
    %v614 = vpack.c.b16 %v509, %v508
    %v615 = vpack.c.b16 %v511, %v510
    %v616 = vpack.c.b16 %v513, %v512
    %v617 = vpack.c.b16 %v515, %v514
    %v618 = vpack.c.b16 %v517, %v516
    %v619 = vpack.c.b16 %v519, %v518
    %v620 = vpack.c.b16 %v521, %v520
    %v621 = vpack.c.b16 %v523, %v522
    %v622 = vpack.c.b16 %v525, %v524
    %v623 = vpack.c.b16 %v527, %v526
    %v624 = vpack.c.b16 %v529, %v528
    %v625 = vpack.c.b16 %v531, %v530
    %v626 = vpack.c.b16 %v533, %v532
    %v627 = vpack.c.b16 %v535, %v534
    %v628 = vpack.c.b16 %v537, %v536
    %v629 = vpack.c.b16 %v539, %v538
    %v630 = vpack.c.b16 %v541, %v540
    %v631 = vpack.c.b16 %v543, %v542
    %v632 = vpack.c.b16 %v545, %v544
    %v633 = vpack.c.b16 %v547, %v546
    %v634 = vpack.c.b16 %v549, %v548
    %v635 = vpack.c.b16 %v551, %v550
    %v636 = vpack.c.b16 %v553, %v552
    %v637 = vpack.c.b16 %v555, %v554
    %v638 = vpack.c.b16 %v557, %v556
    %v639 = vpack.c.b16 %v559, %v558
    %v640 = vpack.c.b16 %v561, %v560
    %v641 = vpack.c.b16 %v563, %v562
    %v642 = vpack.c.b16 %v565, %v564
    %v643 = vpack.c.b16 %v567, %v566
    %v644 = vpack.c.b16 %v569, %v568
    %v645 = vpack.c.b16 %v571, %v570
    %v646 = vpack.c.b16 %v573, %v572
    %v647 = vpack.c.b16 %v575, %v574
    %v648 = vpack.c.b16 %v577, %v576
    %v649 = vpack.c.b16 %v579, %v578
    %v650 = vpack.c.b16 %v581, %v580
    %v651 = vpack.c.b16 %v583, %v582
    %v652 = vpack.c.b16 %v585, %v584
    %v653 = vpack.c.b16 %v587, %v586
    %v654 = vpack.c.b16 %v589, %v588
    %v655 = vpack.c.b16 %v591, %v590
    %720 = vmatprep.subr.bf16.mxu0 0
    %721 = vmatpush1.bf16.msra.mxu0 %v599
    %722 = vmatprep.subr.bf16.mxu0 0
    %723 = vmatpush1.bf16.msra.mxu0 %v598
    %724 = vmatprep.subr.bf16.mxu0 0
    %725 = vmatpush1.bf16.msra.mxu0 %v597
    %726 = vmatprep.subr.bf16.mxu0 0
    %727 = vmatpush1.bf16.msra.mxu0 %v596
    %728 = vmatprep.subr.bf16.mxu0 0
    %729 = vmatpush1.bf16.msra.mxu0 %v595
    %730 = vmatprep.subr.bf16.mxu0 0
    %731 = vmatpush1.bf16.msra.mxu0 %v594
    %732 = vmatprep.subr.bf16.mxu0 0
    %733 = vmatpush1.bf16.msra.mxu0 %v593
    %734 = vmatprep.subr.bf16.mxu0 0
    %735 = vmatpush1.bf16.msra.mxu0 %v592
    %736 = vmatprep.subr.bf16.mxu0 0
    %737 = vmatpush2.bf16.msra.mxu0 %v607
    %738 = vmatprep.subr.bf16.mxu0 0
    %739 = vmatpush2.bf16.msra.mxu0 %v606
    %740 = vmatprep.subr.bf16.mxu0 0
    %741 = vmatpush2.bf16.msra.mxu0 %v605
    %742 = vmatprep.subr.bf16.mxu0 0
    %743 = vmatpush2.bf16.msra.mxu0 %v604
    %744 = vmatprep.subr.bf16.mxu0 0
    %745 = vmatpush2.bf16.msra.mxu0 %v603
    %746 = vmatprep.subr.bf16.mxu0 0
    %747 = vmatpush2.bf16.msra.mxu0 %v602
    %748 = vmatprep.subr.bf16.mxu0 0
    %749 = vmatpush2.bf16.msra.mxu0 %v601
    %750 = vmatprep.subr.bf16.mxu0 0
    %751 = vmatpush2.bf16.msra.mxu0 %v600
    %752 = vmatprep.mubr.bf16.mxu0 %v321
    %753 = vmatmul.mubr.bf16.gmra.mxu0 %v320
    %v754 = vpop.f32.mrf.mxu0
    %v755 = vadd.f32 %v306, %v754
    %v756 = vpop.f32.mrf.mxu0
    %v757 = vpop.f32.mrf.mxu0
    %v758 = vpop.f32.mrf.mxu0
    %759 = vdwg.mxu0
    %760 = vmatprep.subr.bf16.mxu0 0
    %761 = vmatpush1.bf16.msra.mxu0 %v615
    %762 = vmatprep.subr.bf16.mxu0 0
    %763 = vmatpush1.bf16.msra.mxu0 %v614
    %764 = vmatprep.subr.bf16.mxu0 0
    %765 = vmatpush1.bf16.msra.mxu0 %v613
    %766 = vmatprep.subr.bf16.mxu0 0
    %767 = vmatpush1.bf16.msra.mxu0 %v612
    %768 = vmatprep.subr.bf16.mxu0 0
    %769 = vmatpush1.bf16.msra.mxu0 %v611
    %770 = vmatprep.subr.bf16.mxu0 0
    %771 = vmatpush1.bf16.msra.mxu0 %v610
    %772 = vmatprep.subr.bf16.mxu0 0
    %773 = vmatpush1.bf16.msra.mxu0 %v609
    %774 = vmatprep.subr.bf16.mxu0 0
    %775 = vmatpush1.bf16.msra.mxu0 %v608
    %776 = vmatprep.subr.bf16.mxu0 0
    %777 = vmatpush2.bf16.msra.mxu0 %v623
    %778 = vmatprep.subr.bf16.mxu0 0
    %779 = vmatpush2.bf16.msra.mxu0 %v622
    %780 = vmatprep.subr.bf16.mxu0 0
    %781 = vmatpush2.bf16.msra.mxu0 %v621
    %782 = vmatprep.subr.bf16.mxu0 0
    %783 = vmatpush2.bf16.msra.mxu0 %v620
    %784 = vmatprep.subr.bf16.mxu0 0
    %785 = vmatpush2.bf16.msra.mxu0 %v619
    %786 = vmatprep.subr.bf16.mxu0 0
    %787 = vmatpush2.bf16.msra.mxu0 %v618
    %788 = vmatprep.subr.bf16.mxu0 0
    %789 = vmatpush2.bf16.msra.mxu0 %v617
    %790 = vmatprep.subr.bf16.mxu0 0
    %791 = vmatpush2.bf16.msra.mxu0 %v616
    %792 = vmatprep.mubr.bf16.mxu0 %v323
    %793 = vmatmul.mubr.bf16.gmra.mxu0 %v322
    %v794 = vpop.f32.mrf.mxu0
    %v795 = vadd.f32 %v755, %v794
    %v796 = vpop.f32.mrf.mxu0
    %v797 = vpop.f32.mrf.mxu0
    %v798 = vpop.f32.mrf.mxu0
    %799 = vdwg.mxu0
    %800 = vmatprep.subr.bf16.mxu0 0
    %801 = vmatpush1.bf16.msra.mxu0 %v631
    %802 = vmatprep.subr.bf16.mxu0 0
    %803 = vmatpush1.bf16.msra.mxu0 %v630
    %804 = vmatprep.subr.bf16.mxu0 0
    %805 = vmatpush1.bf16.msra.mxu0 %v629
    %806 = vmatprep.subr.bf16.mxu0 0
    %807 = vmatpush1.bf16.msra.mxu0 %v628
    %808 = vmatprep.subr.bf16.mxu0 0
    %809 = vmatpush1.bf16.msra.mxu0 %v627
    %810 = vmatprep.subr.bf16.mxu0 0
    %811 = vmatpush1.bf16.msra.mxu0 %v626
    %812 = vmatprep.subr.bf16.mxu0 0
    %813 = vmatpush1.bf16.msra.mxu0 %v625
    %814 = vmatprep.subr.bf16.mxu0 0
    %815 = vmatpush1.bf16.msra.mxu0 %v624
    %816 = vmatprep.subr.bf16.mxu0 0
    %817 = vmatpush2.bf16.msra.mxu0 %v639
    %818 = vmatprep.subr.bf16.mxu0 0
    %819 = vmatpush2.bf16.msra.mxu0 %v638
    %820 = vmatprep.subr.bf16.mxu0 0
    %821 = vmatpush2.bf16.msra.mxu0 %v637
    %822 = vmatprep.subr.bf16.mxu0 0
    %823 = vmatpush2.bf16.msra.mxu0 %v636
    %824 = vmatprep.subr.bf16.mxu0 0
    %825 = vmatpush2.bf16.msra.mxu0 %v635
    %826 = vmatprep.subr.bf16.mxu0 0
    %827 = vmatpush2.bf16.msra.mxu0 %v634
    %828 = vmatprep.subr.bf16.mxu0 0
    %829 = vmatpush2.bf16.msra.mxu0 %v633
    %830 = vmatprep.subr.bf16.mxu0 0
    %831 = vmatpush2.bf16.msra.mxu0 %v632
    %832 = vmatprep.mubr.bf16.mxu0 %v325
    %833 = vmatmul.mubr.bf16.gmra.mxu0 %v324
    %v834 = vpop.f32.mrf.mxu0
    %v835 = vadd.f32 %v795, %v834
    %v836 = vpop.f32.mrf.mxu0
    %v837 = vpop.f32.mrf.mxu0
    %v838 = vpop.f32.mrf.mxu0
    %839 = vdwg.mxu0
    %840 = vmatprep.subr.bf16.mxu0 0
    %841 = vmatpush1.bf16.msra.mxu0 %v647
    %842 = vmatprep.subr.bf16.mxu0 0
    %843 = vmatpush1.bf16.msra.mxu0 %v646
    %844 = vmatprep.subr.bf16.mxu0 0
    %845 = vmatpush1.bf16.msra.mxu0 %v645
    %846 = vmatprep.subr.bf16.mxu0 0
    %847 = vmatpush1.bf16.msra.mxu0 %v644
    %848 = vmatprep.subr.bf16.mxu0 0
    %849 = vmatpush1.bf16.msra.mxu0 %v643
    %850 = vmatprep.subr.bf16.mxu0 0
    %851 = vmatpush1.bf16.msra.mxu0 %v642
    %852 = vmatprep.subr.bf16.mxu0 0
    %853 = vmatpush1.bf16.msra.mxu0 %v641
    %854 = vmatprep.subr.bf16.mxu0 0
    %855 = vmatpush1.bf16.msra.mxu0 %v640
    %856 = vmatprep.subr.bf16.mxu0 0
    %857 = vmatpush2.bf16.msra.mxu0 %v655
    %858 = vmatprep.subr.bf16.mxu0 0
    %859 = vmatpush2.bf16.msra.mxu0 %v654
    %860 = vmatprep.subr.bf16.mxu0 0
    %861 = vmatpush2.bf16.msra.mxu0 %v653
    %862 = vmatprep.subr.bf16.mxu0 0
    %863 = vmatpush2.bf16.msra.mxu0 %v652
    %864 = vmatprep.subr.bf16.mxu0 0
    %865 = vmatpush2.bf16.msra.mxu0 %v651
    %866 = vmatprep.subr.bf16.mxu0 0
    %867 = vmatpush2.bf16.msra.mxu0 %v650
    %868 = vmatprep.subr.bf16.mxu0 0
    %869 = vmatpush2.bf16.msra.mxu0 %v649
    %870 = vmatprep.subr.bf16.mxu0 0
    %871 = vmatpush2.bf16.msra.mxu0 %v648
    %872 = vmatprep.mubr.bf16.mxu0 %v327
    %873 = vmatmul.mubr.bf16.gmra.mxu0 %v326
    %v874 = vpop.f32.mrf.mxu0
    %v875 = vadd.f32 %v835, %v874
    %v876 = vpop.f32.mrf.mxu0
    %v877 = vpop.f32.mrf.mxu0
    %v878 = vpop.f32.mrf.mxu0
    %879 = vdwg.mxu0
    %v880 = vmul.f32 %v875, %v875
    %881 = vadd.xlane.f32.xlu0 %v880
    %v882 = vpop.xlane.xlu0 %881
    %v883 = vmax.f32 %v882, 1e-24
    %v884 = vrsqrt.pop %v883
    %v885 = vmul.f32 %v875, %v884
    %886 = vst [vmem:[%s4] sm:$0xff] %v885
    // Predicated region
    $region18: #{forward.2} parent=1 // pred_check
      _
    $region19: #{forward.2} parent=1 // pred_check_branch
      %888 = sbr.rel (0) target = $region21
    $region20: #{forward.2} parent=1 // pred_region
      _
    $region21: #{forward.2} parent=1 // pred_fallthru
      _
    // Predicated region
    $region22: #{forward.2} parent=1 // pred_check
      _
    $region23: #{forward.2} parent=1 // pred_check_branch
      %890 = sbr.rel (0) target = $region25
    $region24: #{forward.2} parent=1 // pred_region
      _
    $region25: #{forward.2} parent=1 // pred_fallthru
      _
    %891 = vsyncpa [#allocation8], 1

</llo_original>
